<compile_context>
chip_gen: v7x
topology: tpu7x:2x2x1
jax: 0.10.0
libtpu: 0.0.40
codegen_flags: <defaults>
</compile_context>

<pallas_src>
import math

import jax
import jax.numpy as jnp
from jax.experimental import pallas as pl
from jax.experimental.pallas import tpu as pltpu


def _add_kernel(a_ref, b_ref, o_ref):
    o_ref[...] = a_ref[...] + b_ref[...]


_LANES = 128
_DEFAULT_ROW_TILE = 2048  # multiple of 8; ~1 MiB/buffer at 128 fp32 lanes


def _lane_dense_2d(shape):
    """Pick a 2D [rows, cols] view of a contiguous array with `shape`."""
    n = int(math.prod(shape))
    if n % _LANES == 0:
        return n // _LANES, _LANES          # fully lane-dense view
    if len(shape) >= 2:
        return n // int(shape[-1]), int(shape[-1])  # collapse leading dims
    return 1, n                              # 1-D fallback


def pre_add_op_forward(g, src_emb, hr, *, row_tile=_DEFAULT_ROW_TILE):
    """Pallas implementation of pre_add_op.forward(g, src_emb, hr) = src_emb + hr."""
    del g  # the graph handle is unused by the forward pass

    src_emb = jnp.asarray(src_emb)
    hr = jnp.asarray(hr)
    dt = jnp.result_type(src_emb.dtype, hr.dtype)
    out_shape = jnp.broadcast_shapes(src_emb.shape, hr.shape)
    a = jnp.broadcast_to(src_emb.astype(dt), out_shape)
    b = jnp.broadcast_to(hr.astype(dt), out_shape)

    n = int(math.prod(out_shape))
    if n == 0:
        # Guard: zero-sized BlockSpec/out_shape fails at lowering.
        return jnp.zeros(out_shape, dt)

    rows, cols = _lane_dense_2d(out_shape)
    a2 = a.reshape(rows, cols)   # contiguous reshape: no extra HBM traffic
    b2 = b.reshape(rows, cols)

    if rows <= row_tile:
        tm = rows          # single full-array block (legal for any row count)
        grid = (1,)
    else:
        tm = row_tile      # multiple of 8 -> satisfies the (8, 128) tiling rule
        grid = (pl.cdiv(rows, tm),)

    spec = pl.BlockSpec((tm, cols), lambda i: (i, 0))
    out2 = pl.pallas_call(
        _add_kernel,
        out_shape=jax.ShapeDtypeStruct((rows, cols), dt),
        grid=grid,
        in_specs=[spec, spec],
        out_specs=spec,
        compiler_params=pltpu.CompilerParams(
            dimension_semantics=("parallel",),
        ),
    )(a2, b2)

    return out2.reshape(out_shape)


if __name__ == "__main__":
    key = jax.random.PRNGKey(0)
    k1, k2, k3, k4, k5, k6 = jax.random.split(key, 6)

    # Primary shapes implied by the module: node/edge embeddings [rows, hidden].
    num_nodes, hidden = 16, 32
    src_emb = jax.random.normal(k1, (num_nodes, hidden), dtype=jnp.float32)
    hr = jax.random.normal(k2, (num_nodes, hidden), dtype=jnp.float32)

    out = pre_add_op_forward(None, src_emb, hr)
    out = jax.block_until_ready(out)
    assert out.shape == (num_nodes, hidden)
    assert jnp.allclose(out, src_emb + hr, atol=1e-6, rtol=1e-6)

    # Larger case exercising the row-tiled, double-buffered grid path
    # (3000*96 elements -> lane-dense 2250x128 view, grid of 2 row tiles).
    big_a = jax.random.normal(k3, (3000, 96), dtype=jnp.float32)
    big_b = jax.random.normal(k4, (3000, 96), dtype=jnp.float32)
    big_out = jax.block_until_ready(pre_add_op_forward(None, big_a, big_b))
    assert jnp.allclose(big_out, big_a + big_b, atol=1e-6, rtol=1e-6)

    # Odd shape exercising the non-lane-dense fallback (block == full array).
    odd_a = jax.random.normal(k5, (10, 33), dtype=jnp.float32)
    odd_b = jax.random.normal(k6, (10, 33), dtype=jnp.float32)
    odd_out = jax.block_until_ready(pre_add_op_forward(None, odd_a, odd_b))
    assert jnp.allclose(odd_out, odd_a + odd_b, atol=1e-6, rtol=1e-6)

    print("KERNEL_OK")
</pallas_src>

<mosaic_0001>
module attributes {stable_mosaic.version = 11 : i64} {
  func.func @_add_kernel(%arg0: i32, %arg1: memref<4x128xf32, #tpu.memory_space<vmem>>, %arg2: memref<4x128xf32, #tpu.memory_space<vmem>>, %arg3: memref<4x128xf32, #tpu.memory_space<vmem>>) attributes {dimension_semantics = [#tpu.dimension_semantics<parallel>], iteration_bounds = array<i64: 1>, scalar_prefetch = 0 : i64, scratch_operands = 0 : i64, tpu.core_type = #tpu.core_type<tc>, window_params = [{transform_indices = @transform_0, window_bounds = array<i64: 4, 128>}, {transform_indices = @transform_1, window_bounds = array<i64: 4, 128>}, {transform_indices = @transform_2, window_bounds = array<i64: 4, 128>}]} {
    %c0 = arith.constant 0 : index
    %c0_0 = arith.constant 0 : index
    %0 = vector.load %arg1[%c0, %c0_0] : memref<4x128xf32, #tpu.memory_space<vmem>>, vector<4x128xf32>
    %c0_1 = arith.constant 0 : index
    %c0_2 = arith.constant 0 : index
    %1 = vector.load %arg2[%c0_1, %c0_2] : memref<4x128xf32, #tpu.memory_space<vmem>>, vector<4x128xf32>
    %2 = arith.addf %0, %1 : vector<4x128xf32>
    %c0_3 = arith.constant 0 : index
    %c0_4 = arith.constant 0 : index
    %3 = vector.load %arg3[%c0_3, %c0_4] : memref<4x128xf32, #tpu.memory_space<vmem>>, vector<4x128xf32>
    tpu.vector_store %arg3[%c0_3, %c0_4], %2 {strides = array<i32>} : memref<4x128xf32, #tpu.memory_space<vmem>>, vector<4x128xf32>,
    return
  }
  func.func @transform_0(%arg0: i32) -> (i32, i32) {
    %c0_i32 = arith.constant 0 : i32
    %c0_i32_0 = arith.constant 0 : i32
    return %arg0, %c0_i32 : i32, i32
  }
  func.func @transform_1(%arg0: i32) -> (i32, i32) {
    %c0_i32 = arith.constant 0 : i32
    %c0_i32_0 = arith.constant 0 : i32
    return %arg0, %c0_i32 : i32, i32
  }
  func.func @transform_2(%arg0: i32) -> (i32, i32) {
    %c0_i32 = arith.constant 0 : i32
    %c0_i32_0 = arith.constant 0 : i32
    return %arg0, %c0_i32 : i32, i32
  }
}

</mosaic_0001>

<llo_original>
// kernel: tpu_custom_call.1
$region0: #{tpu_custom_call.1}
  #allocation0 [shape = 'u32[]', space=smem, size = 0x4, offset = 0x4, fixed_abs, tag = 'smem constant byte address 0x4 - core index']
  #allocation1 [shape = 'u32[144,128]{1,0:T(1,128)}', space=vmem, size = 0x12000, scoped, tag = 'internal scratch']
  %s0 = inlined_call_operand.hbm [shape: f32[4,128], index: 0, kind: input, shape index: {}]
  %s1 = inlined_call_operand.hbm [shape: f32[4,128], index: 1, kind: input, shape index: {}]
  %s2 = inlined_call_operand.hbm [shape: f32[4,128], index: 2, kind: output, shape index: {}]
  %s3 = sld [smem:[#allocation0]]
  $region26: #{tpu_custom_call.1} parent=0
    _
  %s5 = ssub.s32 1, %s3
  %s6 = scalar_select 0, %s5, %s3
  $region1: #{tpu_custom_call.1} parent=0
    #allocation2 [shape = 'u8[2048]{0}', space=vmem, size = 0x800, scoped, tag = 'input window, operand 0, single buffered']
    #allocation3 [shape = 's32[1]{0}', space=sflag, size = 0x4, scoped, tag = 'scoped memory for tpu_custom_call.1']
    #allocation4 [shape = 's32[1]{0}', space=sflag, size = 0x4, scoped, tag = 'scoped memory for tpu_custom_call.1']
    #allocation5 [shape = 'u8[2048]{0}', space=vmem, size = 0x800, scoped, tag = 'input window, operand 1, single buffered']
    #allocation6 [shape = 's32[1]{0}', space=sflag, size = 0x4, scoped, tag = 'scoped memory for tpu_custom_call.1']
    #allocation7 [shape = 'u8[2048]{0}', space=vmem, size = 0x800, scoped, tag = 'output window, operand 0, single buffered']
    %7 = vsyncpa [#allocation3], 0
    %8 = vsyncpa [#allocation6], 0
    %9 = vsyncpa [#allocation4], 0
    // Predicated region
    $region2: #{tpu_custom_call.1} parent=1 // pred_check
      _
    $region3: #{tpu_custom_call.1} parent=1 // pred_check_branch
      %11 = sbr.rel (0) target = $region5
    $region4: #{tpu_custom_call.1} parent=1 // pred_region
      %s13 = ssub.s32 64, 64
      %14 = vsyncadd [#allocation3], %s13
      %s16 = sshll.u32 [#allocation2], 4
      %s17 = int_to_ptr.vmem [resolvable:$true] %s16
      %19 = dma.hbm_to_vmem [thread:$0]  %s0, 64, %s17, [#allocation3]
    $region5: #{tpu_custom_call.1} parent=1 // pred_fallthru
      _
    // Predicated region
    $region6: #{tpu_custom_call.1} parent=1 // pred_check
      _
    $region7: #{tpu_custom_call.1} parent=1 // pred_check_branch
      %21 = sbr.rel (0) target = $region9
    $region8: #{tpu_custom_call.1} parent=1 // pred_region
      %s23 = ssub.s32 64, 64
      %24 = vsyncadd [#allocation6], %s23
      %s26 = sshll.u32 [#allocation5], 4
      %s27 = int_to_ptr.vmem [resolvable:$true] %s26
      %29 = dma.hbm_to_vmem [thread:$0]  %s1, 64, %s27, [#allocation6]
    $region9: #{tpu_custom_call.1} parent=1 // pred_fallthru
      _
    // Predicated region
    $region10: #{tpu_custom_call.1} parent=1 // pred_check
      _
    $region11: #{tpu_custom_call.1} parent=1 // pred_check_branch
      %31 = sbr.rel (0) target = $region13
    $region12: #{tpu_custom_call.1} parent=1 // pred_region
      %32 = dma.done [#allocation3], 64
    $region13: #{tpu_custom_call.1} parent=1 // pred_fallthru
      _
    // Predicated region
    $region14: #{tpu_custom_call.1} parent=1 // pred_check
      _
    $region15: #{tpu_custom_call.1} parent=1 // pred_check_branch
      %34 = sbr.rel (0) target = $region17
    $region16: #{tpu_custom_call.1} parent=1 // pred_region
      %35 = dma.done [#allocation6], 64
    $region17: #{tpu_custom_call.1} parent=1 // pred_fallthru
      _
    %v36 = vld [vmem:[#allocation2] sm:$0xf]
    %v37 = vld [vmem:[#allocation5] sm:$0xf]
    %v38 = vadd.f32 %v36, %v37
    %39 = vst [vmem:[#allocation7] sm:$0xf] %v38
    // Predicated region
    $region18: #{tpu_custom_call.1} parent=1 // pred_check
      _
    $region19: #{tpu_custom_call.1} parent=1 // pred_check_branch
      %41 = sbr.rel (0) target = $region21
    $region20: #{tpu_custom_call.1} parent=1 // pred_region
      %s43 = ssub.s32 64, 64
      %44 = vsyncadd [#allocation4], %s43
      %s46 = sshll.u32 [#allocation7], 4
      %s47 = int_to_ptr.vmem [resolvable:$true] %s46
      %49 = dma.vmem_to_hbm [thread:$0]  %s47, 64, %s2, [#allocation4]
    $region21: #{tpu_custom_call.1} parent=1 // pred_fallthru
      _
    // Predicated region
    $region22: #{tpu_custom_call.1} parent=1 // pred_check
      _
    $region23: #{tpu_custom_call.1} parent=1 // pred_check_branch
      %51 = sbr.rel (0) target = $region25
    $region24: #{tpu_custom_call.1} parent=1 // pred_region
      %52 = dma.done [#allocation4], 64
    $region25: #{tpu_custom_call.1} parent=1 // pred_fallthru
      _
    %53 = vsyncpa [#allocation3], 1
    %54 = vsyncpa [#allocation6], 1
    %55 = vsyncpa [#allocation4], 1

</llo_original>
